<compile_context>
chip_gen: v7x
topology: tpu7x:2x2x1
jax: 0.10.0
libtpu: 0.0.40
codegen_flags: <defaults>
</compile_context>

<pallas_src>
import functools

import jax
import jax.numpy as jnp
from jax import lax
from jax.experimental import pallas as pl
from jax.experimental.pallas import tpu as pltpu

BN_EPS = 1e-5
_VPU_CONV_MAX_C = 8


def _conv1x1(w, x, c):
    """1x1 conv as a matmul. w: (Cout, Cin) f32, x: (Cin, T) f32 -> (Cout, T) f32."""
    if c <= _VPU_CONV_MAX_C:
        # VPU broadcast-FMA over input channels: (C,1) * (1,T), accumulated.
        y = w[:, 0:1] * x[0:1, :]
        for k in range(1, c):
            y = y + w[:, k:k + 1] * x[k:k + 1, :]
        return y
    return jnp.dot(w, x, preferred_element_type=jnp.float32)


def _stats_kernel(x_ref, w_ref, sum_ref, sq_ref, *, c):
    # x_ref: (1, C, T); w_ref: (C, C); sum_ref/sq_ref: (1, C, 1) per-batch accumulators.
    @pl.when(pl.program_id(1) == 0)
    def _():
        sum_ref[...] = jnp.zeros_like(sum_ref)
        sq_ref[...] = jnp.zeros_like(sq_ref)

    x = x_ref[0].astype(jnp.float32)           # (C, T)
    w = w_ref[...].astype(jnp.float32)         # (C, C)
    y = _conv1x1(w, x, c)                      # (C, T)
    sum_ref[0] += jnp.sum(y, axis=1, keepdims=True)
    sq_ref[0] += jnp.sum(y * y, axis=1, keepdims=True)


def _norm_kernel(x_ref, w_ref, shift_ref, o_ref, *, c):
    # x_ref: (1, C, T); w_ref: (C, C) BN-scaled weight; shift_ref: (C, 1); o_ref: (1, C, T)
    x = x_ref[0].astype(jnp.float32)
    w = w_ref[...].astype(jnp.float32)
    y = _conv1x1(w, x, c) + shift_ref[...]     # (C, T) + (C, 1) broadcast
    o_ref[0] = y.astype(o_ref.dtype)


def _pick_hw_tile(hw):
    for t in (8192, 4096, 2048, 1024, 512, 256, 128):
        if hw % t == 0:
            return t
    return hw  # full extent (allowed when block dim equals array dim)


def transform_forward(x_nchw, conv_w, gamma, beta, eps=BN_EPS):
    """x_nchw: (N, C, H, W); conv_w: (Cout, Cin) (squeezed 1x1 weight);
    gamma, beta: (C,). Returns (N, C, H, W) with train-mode BatchNorm semantics."""
    n, c, h, w = x_nchw.shape
    hw = h * w
    m = n * hw
    t_hw = _pick_hw_tile(hw)
    grid = (n, hw // t_hw)

    x3 = x_nchw.reshape(n, c, hw)              # free view of NCHW, no transpose
    w_f32 = conv_w.astype(jnp.float32)

    tile_bytes = c * t_hw * 4
    vmem_limit = int(min(64 * 1024 * 1024, max(8 * 1024 * 1024, 8 * tile_bytes)))

    x_spec = pl.BlockSpec((1, c, t_hw), lambda i, j: (i, 0, j))
    w_spec = pl.BlockSpec((c, c), lambda i, j: (0, 0))   # resident across the grid

    # ---- Pass 1: streamed per-batch per-channel sum / sumsq of y = W @ x ----
    stats_cost = pl.CostEstimate(
        flops=2 * m * c * c + 4 * m * c,
        transcendentals=0,
        bytes_accessed=4 * m * c + 4 * c * c + 8 * n * c,
    )
    sum_nc, sq_nc = pl.pallas_call(
        functools.partial(_stats_kernel, c=c),
        out_shape=(jax.ShapeDtypeStruct((n, c, 1), jnp.float32),
                   jax.ShapeDtypeStruct((n, c, 1), jnp.float32)),
        grid=grid,
        in_specs=[x_spec, w_spec],
        out_specs=(pl.BlockSpec((1, c, 1), lambda i, j: (i, 0, 0)),
                   pl.BlockSpec((1, c, 1), lambda i, j: (i, 0, 0))),
        compiler_params=pltpu.CompilerParams(
            dimension_semantics=("parallel", "arbitrary"),
            vmem_limit_bytes=vmem_limit),
        cost_estimate=stats_cost,
    )(x3, w_f32)

    # ---- Tiny per-channel stats math (C scalars) in plain JAX, f32 ----
    total = jnp.float32(m)
    s = jnp.sum(sum_nc[:, :, 0], axis=0)
    sq = jnp.sum(sq_nc[:, :, 0], axis=0)
    mean = s / total
    var = jnp.maximum(sq / total - mean * mean, 0.0)   # biased variance (train-mode BN)
    inv_std = lax.rsqrt(var + eps)
    scale = gamma.astype(jnp.float32) * inv_std
    shift = (beta.astype(jnp.float32) - mean * scale).reshape(c, 1)
    w_scaled = w_f32 * scale[:, None]                  # fold BN scale into conv rows

    # ---- Pass 2: out = (scale*W) @ x + shift, fully parallel streamed grid ----
    norm_cost = pl.CostEstimate(
        flops=2 * m * c * c + m * c,
        transcendentals=0,
        bytes_accessed=8 * m * c + 4 * c * c + 4 * c,
    )
    out3 = pl.pallas_call(
        functools.partial(_norm_kernel, c=c),
        out_shape=jax.ShapeDtypeStruct((n, c, hw), x_nchw.dtype),
        grid=grid,
        in_specs=[x_spec, w_spec, pl.BlockSpec((c, 1), lambda i, j: (0, 0))],
        out_specs=pl.BlockSpec((1, c, t_hw), lambda i, j: (i, 0, j)),
        compiler_params=pltpu.CompilerParams(
            dimension_semantics=("parallel", "parallel"),
            vmem_limit_bytes=vmem_limit),
        cost_estimate=norm_cost,
    )(x3, w_scaled, shift)

    return out3.reshape(n, c, h, w)


if __name__ == "__main__":
    key = jax.random.PRNGKey(0)
    k_x, k_w = jax.random.split(key)

    N, C, H, W = 2, 4, 16, 16
    x = jax.random.normal(k_x, (N, C, H, W), dtype=jnp.float32)

    # Deterministic parameter init (shapes from nn.Conv2d(C, C, 1) / nn.BatchNorm2d(C)).
    fan_in = C  # 1x1 kernel
    bound = 1.0 / (fan_in ** 0.5)
    conv_w = jax.random.uniform(k_w, (C, C), minval=-bound, maxval=bound,
                                dtype=jnp.float32)  # (Cout, Cin)
    gamma = jnp.ones((C,), dtype=jnp.float32)   # BN weight init
    beta = jnp.zeros((C,), dtype=jnp.float32)   # BN bias init

    out = transform_forward(x, conv_w, gamma, beta)
    jax.block_until_ready(out)

    # Reference: plain JAX, same semantics as PyTorch train-mode BN (biased batch stats).
    y_ref = jnp.einsum("nchw,oc->nohw", x, conv_w)
    mean_ref = jnp.mean(y_ref, axis=(0, 2, 3), keepdims=True)
    var_ref = jnp.mean((y_ref - mean_ref) ** 2, axis=(0, 2, 3), keepdims=True)
    ref = (y_ref - mean_ref) / jnp.sqrt(var_ref + BN_EPS) * gamma.reshape(1, C, 1, 1) \
          + beta.reshape(1, C, 1, 1)

    assert out.shape == (N, C, H, W)
    assert jnp.allclose(out, ref, atol=1e-4, rtol=1e-4), \
        float(jnp.max(jnp.abs(out - ref)))

    print("KERNEL_OK")
</pallas_src>

<mosaic_0001>
module attributes {stable_mosaic.version = 11 : i64} {
  func.func @_stats_kernel(%arg0: i32, %arg1: i32, %arg2: memref<1x4x256xf32, #tpu.memory_space<vmem>>, %arg3: memref<4x4xf32, #tpu.memory_space<vmem>>, %arg4: memref<1x4x1xf32, #tpu.memory_space<vmem>>, %arg5: memref<1x4x1xf32, #tpu.memory_space<vmem>>) attributes {dimension_semantics = [#tpu.dimension_semantics<parallel>, #tpu.dimension_semantics<arbitrary>], iteration_bounds = array<i64: 2, 1>, scalar_prefetch = 0 : i64, scratch_operands = 0 : i64, tpu.core_type = #tpu.core_type<tc>, window_params = [{transform_indices = @transform_0, window_bounds = array<i64: 1, 4, 256>}, {pipeline_mode = #tpu.pipeline_mode<synchronous>, transform_indices = @transform_1, window_bounds = array<i64: 4, 4>}, {transform_indices = @transform_2, window_bounds = array<i64: 1, 4, 1>}, {transform_indices = @transform_3, window_bounds = array<i64: 1, 4, 1>}]} {
    %c0_i32 = arith.constant 0 : i32
    %0 = arith.cmpi eq, %arg1, %c0_i32 : i32
    %1 = arith.extui %0 : i1 to i32
    %c0_i32_0 = arith.constant 0 : i32
    %2 = arith.cmpi ne, %1, %c0_i32_0 : i32
    scf.if %2 {
      %cst_18 = arith.constant 0.000000e+00 : f32
      %46 = vector.broadcast %cst_18 : f32 to vector<1x4x1xf32>
      %c0_19 = arith.constant 0 : index
      %c0_20 = arith.constant 0 : index
      %c0_21 = arith.constant 0 : index
      %47 = vector.load %arg4[%c0_19, %c0_20, %c0_21] : memref<1x4x1xf32, #tpu.memory_space<vmem>>, vector<1x4x1xf32>
      tpu.vector_store %arg4[%c0_19, %c0_20, %c0_21], %46 {strides = array<i32>} : memref<1x4x1xf32, #tpu.memory_space<vmem>>, vector<1x4x1xf32>,
      %cst_22 = arith.constant 0.000000e+00 : f32
      %48 = vector.broadcast %cst_22 : f32 to vector<1x4x1xf32>
      %c0_23 = arith.constant 0 : index
      %c0_24 = arith.constant 0 : index
      %c0_25 = arith.constant 0 : index
      %49 = vector.load %arg5[%c0_23, %c0_24, %c0_25] : memref<1x4x1xf32, #tpu.memory_space<vmem>>, vector<1x4x1xf32>
      tpu.vector_store %arg5[%c0_23, %c0_24, %c0_25], %48 {strides = array<i32>} : memref<1x4x1xf32, #tpu.memory_space<vmem>>, vector<1x4x1xf32>,
    } else {
    }
    %c0 = arith.constant 0 : index
    %c0_1 = arith.constant 0 : index
    %c0_2 = arith.constant 0 : index
    %3 = vector.load %arg2[%c0, %c0_1, %c0_2] : memref<1x4x256xf32, #tpu.memory_space<vmem>>, vector<1x4x256xf32>
    %4 = vector.shape_cast %3 : vector<1x4x256xf32> to vector<4x256xf32>
    %c0_3 = arith.constant 0 : index
    %c0_4 = arith.constant 0 : index
    %5 = vector.load %arg3[%c0_3, %c0_4] : memref<4x4xf32, #tpu.memory_space<vmem>>, vector<4x4xf32>
    %6 = vector.extract_strided_slice %5 {offsets = [0, 0], sizes = [4, 1], strides = [1, 1]} : vector<4x4xf32> to vector<4x1xf32>
    %7 = vector.extract_strided_slice %4 {offsets = [0, 0], sizes = [1, 256], strides = [1, 1]} : vector<4x256xf32> to vector<1x256xf32>
    %8 = vector.broadcast %6 : vector<4x1xf32> to vector<4x256xf32>
    %9 = vector.broadcast %7 : vector<1x256xf32> to vector<4x256xf32>
    %10 = arith.mulf %8, %9 : vector<4x256xf32>
    %11 = vector.extract_strided_slice %5 {offsets = [0, 1], sizes = [4, 1], strides = [1, 1]} : vector<4x4xf32> to vector<4x1xf32>
    %12 = vector.extract_strided_slice %4 {offsets = [1, 0], sizes = [1, 256], strides = [1, 1]} : vector<4x256xf32> to vector<1x256xf32>
    %13 = vector.broadcast %11 : vector<4x1xf32> to vector<4x256xf32>
    %14 = vector.broadcast %12 : vector<1x256xf32> to vector<4x256xf32>
    %15 = arith.mulf %13, %14 : vector<4x256xf32>
    %16 = arith.addf %10, %15 : vector<4x256xf32>
    %17 = vector.extract_strided_slice %5 {offsets = [0, 2], sizes = [4, 1], strides = [1, 1]} : vector<4x4xf32> to vector<4x1xf32>
    %18 = vector.extract_strided_slice %4 {offsets = [2, 0], sizes = [1, 256], strides = [1, 1]} : vector<4x256xf32> to vector<1x256xf32>
    %19 = vector.broadcast %17 : vector<4x1xf32> to vector<4x256xf32>
    %20 = vector.broadcast %18 : vector<1x256xf32> to vector<4x256xf32>
    %21 = arith.mulf %19, %20 : vector<4x256xf32>
    %22 = arith.addf %16, %21 : vector<4x256xf32>
    %23 = vector.extract_strided_slice %5 {offsets = [0, 3], sizes = [4, 1], strides = [1, 1]} : vector<4x4xf32> to vector<4x1xf32>
    %24 = vector.extract_strided_slice %4 {offsets = [3, 0], sizes = [1, 256], strides = [1, 1]} : vector<4x256xf32> to vector<1x256xf32>
    %25 = vector.broadcast %23 : vector<4x1xf32> to vector<4x256xf32>
    %26 = vector.broadcast %24 : vector<1x256xf32> to vector<4x256xf32>
    %27 = arith.mulf %25, %26 : vector<4x256xf32>
    %28 = arith.addf %22, %27 : vector<4x256xf32>
    %c0_5 = arith.constant 0 : index
    %c0_6 = arith.constant 0 : index
    %c0_7 = arith.constant 0 : index
    %29 = vector.load %arg4[%c0_5, %c0_6, %c0_7] : memref<1x4x1xf32, #tpu.memory_space<vmem>>, vector<1x4x1xf32>
    %30 = vector.shape_cast %29 : vector<1x4x1xf32> to vector<4x1xf32>
    %cst = arith.constant dense<0.000000e+00> : vector<4xf32>
    %31 = vector.multi_reduction <add>, %28, %cst [1] : vector<4x256xf32> to vector<4xf32>
    %32 = vector.shape_cast %31 : vector<4xf32> to vector<4x1xf32>
    %33 = arith.addf %30, %32 : vector<4x1xf32>
    %c0_8 = arith.constant 0 : index
    %c0_9 = arith.constant 0 : index
    %c0_10 = arith.constant 0 : index
    %34 = vector.load %arg4[%c0_8, %c0_9, %c0_10] : memref<1x4x1xf32, #tpu.memory_space<vmem>>, vector<1x4x1xf32>
    %35 = vector.shape_cast %34 : vector<1x4x1xf32> to vector<4x1xf32>
    %36 = vector.shape_cast %33 : vector<4x1xf32> to vector<1x4x1xf32>
    tpu.vector_store %arg4[%c0_8, %c0_9, %c0_10], %36 {strides = array<i32>} : memref<1x4x1xf32, #tpu.memory_space<vmem>>, vector<1x4x1xf32>,
    %c0_11 = arith.constant 0 : index
    %c0_12 = arith.constant 0 : index
    %c0_13 = arith.constant 0 : index
    %37 = vector.load %arg5[%c0_11, %c0_12, %c0_13] : memref<1x4x1xf32, #tpu.memory_space<vmem>>, vector<1x4x1xf32>
    %38 = vector.shape_cast %37 : vector<1x4x1xf32> to vector<4x1xf32>
    %39 = arith.mulf %28, %28 : vector<4x256xf32>
    %cst_14 = arith.constant dense<0.000000e+00> : vector<4xf32>
    %40 = vector.multi_reduction <add>, %39, %cst_14 [1] : vector<4x256xf32> to vector<4xf32>
    %41 = vector.shape_cast %40 : vector<4xf32> to vector<4x1xf32>
    %42 = arith.addf %38, %41 : vector<4x1xf32>
    %c0_15 = arith.constant 0 : index
    %c0_16 = arith.constant 0 : index
    %c0_17 = arith.constant 0 : index
    %43 = vector.load %arg5[%c0_15, %c0_16, %c0_17] : memref<1x4x1xf32, #tpu.memory_space<vmem>>, vector<1x4x1xf32>
    %44 = vector.shape_cast %43 : vector<1x4x1xf32> to vector<4x1xf32>
    %45 = vector.shape_cast %42 : vector<4x1xf32> to vector<1x4x1xf32>
    tpu.vector_store %arg5[%c0_15, %c0_16, %c0_17], %45 {strides = array<i32>} : memref<1x4x1xf32, #tpu.memory_space<vmem>>, vector<1x4x1xf32>,
    return
  }
  func.func @transform_0(%arg0: i32, %arg1: i32) -> (i32, i32, i32) {
    %c0_i32 = arith.constant 0 : i32
    %c0_i32_0 = arith.constant 0 : i32
    return %arg0, %c0_i32, %arg1 : i32, i32, i32
  }
  func.func @transform_1(%arg0: i32, %arg1: i32) -> (i32, i32) {
    %c0_i32 = arith.constant 0 : i32
    %c0_i32_0 = arith.constant 0 : i32
    %c0_i32_1 = arith.constant 0 : i32
    return %c0_i32, %c0_i32_0 : i32, i32
  }
  func.func @transform_2(%arg0: i32, %arg1: i32) -> (i32, i32, i32) {
    %c0_i32 = arith.constant 0 : i32
    %c0_i32_0 = arith.constant 0 : i32
    %c0_i32_1 = arith.constant 0 : i32
    return %arg0, %c0_i32, %c0_i32_0 : i32, i32, i32
  }
  func.func @transform_3(%arg0: i32, %arg1: i32) -> (i32, i32, i32) {
    %c0_i32 = arith.constant 0 : i32
    %c0_i32_0 = arith.constant 0 : i32
    %c0_i32_1 = arith.constant 0 : i32
    return %arg0, %c0_i32, %c0_i32_0 : i32, i32, i32
  }
}

</mosaic_0001>

<llo_original>
// kernel: tpu_custom_call.1
$region0: #{tpu_custom_call.1}
  #allocation0 [shape = 'u32[]', space=smem, size = 0x4, offset = 0x4, fixed_abs, tag = 'smem constant byte address 0x4 - core index']
  #allocation1 [shape = 'u32[144,128]{1,0:T(1,128)}', space=vmem, size = 0x12000, scoped, tag = 'internal scratch']
  %s0 = inlined_call_operand.hbm [shape: f32[2,4,256], index: 0, kind: input, shape index: {}]
  %s1 = inlined_call_operand.hbm [shape: f32[4,4], index: 1, kind: input, shape index: {}]
  %s2 = inlined_call_operand.vmem [shape: f32[2,4,1], index: 2, kind: output, shape index: {0}]
  %s3 = inlined_call_operand.vmem [shape: f32[2,4,1], index: 3, kind: output, shape index: {1}]
  %4 = xla_tuple %s2, %s3
  %s5 = sld [smem:[#allocation0]]
  $region61: #{tpu_custom_call.1} parent=0
    _
  %s7 = ssub.s32 1, %s5
  %s8 = scalar_select 0, %s7, %s5
  $region1: #{tpu_custom_call.1} parent=0
    #allocation2 [shape = 'u8[8192]{0}', space=vmem, size = 0x2000, scoped, tag = 'input window, operand 0']
    #allocation3 [shape = 's32[2]{0}', space=sflag, size = 0x8, scoped, tag = 'scoped memory for tpu_custom_call.1']
    #allocation4 [shape = 'u8[2048]{0}', space=vmem, size = 0x800, scoped, tag = 'input window, operand 1, single buffered']
    #allocation5 [shape = 's32[1]{0}', space=sflag, size = 0x4, scoped, tag = 'scoped memory for tpu_custom_call.1']
    %9 = vsyncpa [#allocation3], 0
    %s10 = scalar_lea.sflag [#allocation3], 1
    %11 = vsyncpa %s10, 0
    %12 = vsyncpa [#allocation5], 0
    loop: start=0, step=1, limit=4
    $region2: #{tpu_custom_call.1} parent=1 // loop_pre_header
      _
    $region3: #{tpu_custom_call.1} parent=1 // loop_header
      %s14 = sphi 0, %s18
      %p15 = scmp.ge.s32.totalorder %s14, 4
      %s21 = sphi 0, %s33
      %s22 = sphi 0, %s29
      %s23 = sphi 0, %s21
      %s24 = sphi 0, %s22
      %s25 = sphi 0, %s23
      %s26 = sphi 0, %s24
      %s38 = sphi 0, %s40
      %s41 = sphi 0, %s38
      %s42 = sphi 0, %s41
      %s58 = sphi 0, %s42
      %s62 = sphi 0, %s62
      %s64 = sphi 0, %s62
      %s65 = sphi 0, %s64
      %s79 = sphi 0, %s65
      %s85 = sphi 0, %s87
      %s88 = sphi 0, %s85
      %s89 = sphi 0, %s88
      %s105 = sphi 0, %s89
      %s111 = sphi 0, %s113
      %s114 = sphi 0, %s111
      %s115 = sphi 0, %s114
      %s131 = sphi 0, %s115
    $region4: #{tpu_custom_call.1} parent=1 // loop_header_branch
      %17 = sbr.rel (%p15) target = $region8
    $region5: #{tpu_custom_call.1} parent=1 // loop_body
      %s19 = ssub.s32 %s14, 1
      %s20 = ssub.s32 %s14, 2
      %s27 = sadd.s32 1, %s22
      %p28 = scmp.ge.s32.totalorder %s27, 1
      %s29 = scalar_select %p28, 0, %s27
      %s30 = sadd.s32 1, %s21
      %s31 = scalar_select %p28, %s30, %s21
      %p32 = scmp.ge.s32.totalorder %s31, 2
      %s33 = scalar_select %p32, 0, %s31
      %s34 = ssub.s32 %s21, %s33
      %s35 = ssub.s32 %s22, %s29
      %s36 = sor.u32 %s34, %s35
      %p37 = scmp.eq.s32.totalorder %s36, 0
      %s39 = sadd.s32 %s38, 1
      %s40 = scalar_select %p37, %s38, %s39
      %p43 = pneg %p37
      %p44 = scmp.eq.s32.totalorder %s14, 1
      %p45 = por %p43, %p44
      %p46 = scmp.ne.s32.totalorder %s38, %s41
      %p47 = scmp.eq.s32.totalorder %s14, 0
      %p48 = por %p46, %p47
      %p49 = scmp.ne.s32.totalorder %s38, %s41
      %p50 = scmp.eq.s32.totalorder %s19, 1
      %p51 = por %p49, %p50
      %p52 = scmp.ne.s32.totalorder %s41, %s42
      %p53 = scmp.eq.s32.totalorder %s19, 0
      %p54 = por %p52, %p53
      %p55 = scmp.ne.s32.totalorder %s41, %s42
      %p56 = scmp.eq.s32.totalorder %s20, 1
      %p57 = por %p55, %p56
      %p59 = scmp.ne.s32.totalorder %s42, %s58
      %p60 = scmp.eq.s32.totalorder %s20, 0
      %p61 = por %p59, %p60
      %s63 = sadd.s32 %s62, 1
      %p66 = scmp.eq.s32.totalorder %s14, 1
      %p67 = scmp.ne.s32.totalorder %s62, %s64
      %p68 = scmp.eq.s32.totalorder %s14, 0
      %p69 = por %p67, %p68
      %p70 = scmp.ne.s32.totalorder %s62, %s64
      %p71 = scmp.eq.s32.totalorder %s19, 1
      %p72 = por %p70, %p71
      %p73 = scmp.ne.s32.totalorder %s64, %s65
      %p74 = scmp.eq.s32.totalorder %s19, 0
      %p75 = por %p73, %p74
      %p76 = scmp.ne.s32.totalorder %s64, %s65
      %p77 = scmp.eq.s32.totalorder %s20, 1
      %p78 = por %p76, %p77
      %p80 = scmp.ne.s32.totalorder %s65, %s79
      %p81 = scmp.eq.s32.totalorder %s20, 0
      %p82 = por %p80, %p81
      %s83 = ssub.s32 %s21, %s33
      %p84 = scmp.eq.s32.totalorder %s83, 0
      %s86 = sadd.s32 %s85, 1
      %s87 = scalar_select %p84, %s85, %s86
      %p90 = pneg %p84
      %p91 = scmp.eq.s32.totalorder %s14, 1
      %p92 = por %p90, %p91
      %p93 = scmp.ne.s32.totalorder %s85, %s88
      %p94 = scmp.eq.s32.totalorder %s14, 0
      %p95 = por %p93, %p94
      %p96 = scmp.ne.s32.totalorder %s85, %s88
      %p97 = scmp.eq.s32.totalorder %s19, 1
      %p98 = por %p96, %p97
      %p99 = scmp.ne.s32.totalorder %s88, %s89
      %p100 = scmp.eq.s32.totalorder %s19, 0
      %p101 = por %p99, %p100
      %p102 = scmp.ne.s32.totalorder %s88, %s89
      %p103 = scmp.eq.s32.totalorder %s20, 1
      %p104 = por %p102, %p103
      %p106 = scmp.ne.s32.totalorder %s89, %s105
      %p107 = scmp.eq.s32.totalorder %s20, 0
      %p108 = por %p106, %p107
      %s109 = ssub.s32 %s21, %s33
      %p110 = scmp.eq.s32.totalorder %s109, 0
      %s112 = sadd.s32 %s111, 1
      %s113 = scalar_select %p110, %s111, %s112
      %p116 = pneg %p110
      %p117 = scmp.eq.s32.totalorder %s14, 1
      %p118 = por %p116, %p117
      %p119 = scmp.ne.s32.totalorder %s111, %s114
      %p120 = scmp.eq.s32.totalorder %s14, 0
      %p121 = por %p119, %p120
      %p122 = scmp.ne.s32.totalorder %s111, %s114
      %p123 = scmp.eq.s32.totalorder %s19, 1
      %p124 = por %p122, %p123
      %p125 = scmp.ne.s32.totalorder %s114, %s115
      %p126 = scmp.eq.s32.totalorder %s19, 0
      %p127 = por %p125, %p126
      %p128 = scmp.ne.s32.totalorder %s114, %s115
      %p129 = scmp.eq.s32.totalorder %s20, 1
      %p130 = por %p128, %p129
      %p132 = scmp.ne.s32.totalorder %s115, %s131
      %p133 = scmp.eq.s32.totalorder %s20, 0
      %p134 = por %p132, %p133
      %p135 = scmp.le.s32.totalorder 1, %s14
      %p136 = scmp.lt.s32.totalorder %s14, 3
      %p137 = pnand %p135, %p136
      %p138 = pneg %p137
      // Predicated region
      $region9: #{tpu_custom_call.1} parent=5 // pred_check
        _
      $region10: #{tpu_custom_call.1} parent=5 // pred_check_branch
        %140 = sbr.rel (%p137) target = $region12
      $region11: #{tpu_custom_call.1} parent=5 // pred_region
        %s141 = ssub.s32 %s14, 1
        // Predicated region
        $region13: #{tpu_custom_call.1} parent=11 // pred_check
          %p142 = pneg %p75
        $region14: #{tpu_custom_call.1} parent=11 // pred_check_branch
          %144 = sbr.rel (%p142) target = $region16
        $region15: #{tpu_custom_call.1} parent=11 // pred_region
          %s146 = ssub.s32 64, 64
          %147 = vsyncadd [#allocation5], %s146
          %s149 = sshll.u32 [#allocation4], 4
          %s150 = int_to_ptr.vmem [resolvable:$true] %s149
          %152 = dma.hbm_to_vmem [thread:$0]  %s1, 64, %s150, [#allocation5]
        $region16: #{tpu_custom_call.1} parent=11 // pred_fallthru
          _
      $region12: #{tpu_custom_call.1} parent=5 // pred_fallthru
        _
      %p153 = scmp.lt.s32.totalorder %s14, 2
      // Predicated region
      $region17: #{tpu_custom_call.1} parent=5 // pred_check
        %p154 = pneg %p153
      $region18: #{tpu_custom_call.1} parent=5 // pred_check_branch
        %156 = sbr.rel (%p154) target = $region20
      $region19: #{tpu_custom_call.1} parent=5 // pred_region
        // Predicated region
        $region21: #{tpu_custom_call.1} parent=19 // pred_check
          %p157 = pneg %p48
        $region22: #{tpu_custom_call.1} parent=19 // pred_check_branch
          %159 = sbr.rel (%p157) target = $region24
        $region23: #{tpu_custom_call.1} parent=19 // pred_region
          %s160 = sand.u32 %s38, 1
          %s161 = scalar_lea.sflag [#allocation3], %s160
          %s162 = sand.u32 %s38, 1
          %s163 = smul.addr %s162, 8
          %s164 = scalar_lea.vmem [#allocation2], %s163
          %s165 = smul.u32 2, %s22
          %s167 = ssub.s32 128, 128
          %168 = vsyncadd %s161, %s167
          %s169 = smul.addr %s21, 2
          %s170 = sadd.s32 %s165, %s169
          %s171 = smul.addr %s170, 64
          %s172 = scalar_lea.hbm %s0, %s171
          %s174 = sshll.u32 %s164, 4
          %s175 = int_to_ptr.vmem [resolvable:$true] %s174
          %177 = dma.hbm_to_vmem [thread:$0]  %s172, 128, %s175, %s161
        $region24: #{tpu_custom_call.1} parent=19 // pred_fallthru
          _
      $region20: #{tpu_custom_call.1} parent=5 // pred_fallthru
        _
      %p178 = scmp.le.s32.totalorder 1, %s14
      %p179 = scmp.lt.s32.totalorder %s14, 3
      %p180 = pnand %p178, %p179
      %p181 = pneg %p180
      // Predicated region
      $region25: #{tpu_custom_call.1} parent=5 // pred_check
        _
      $region26: #{tpu_custom_call.1} parent=5 // pred_check_branch
        %183 = sbr.rel (%p180) target = $region28
      $region27: #{tpu_custom_call.1} parent=5 // pred_region
        %s184 = ssub.s32 %s14, 1
        %s185 = sand.u32 %s41, 1
        %s186 = scalar_lea.sflag [#allocation3], %s185
        %s187 = sand.u32 %s41, 1
        %s188 = smul.addr %s187, 8
        %s189 = scalar_lea.vmem [#allocation2], %s188
        // Predicated region
        $region29: #{tpu_custom_call.1} parent=27 // pred_check
          %p190 = pneg %p54
        $region30: #{tpu_custom_call.1} parent=27 // pred_check_branch
          %192 = sbr.rel (%p190) target = $region32
        $region31: #{tpu_custom_call.1} parent=27 // pred_region
          %193 = dma.done %s186, 128
        $region32: #{tpu_custom_call.1} parent=27 // pred_fallthru
          _
        // Predicated region
        $region33: #{tpu_custom_call.1} parent=27 // pred_check
          %p194 = pneg %p75
        $region34: #{tpu_custom_call.1} parent=27 // pred_check_branch
          %196 = sbr.rel (%p194) target = $region36
        $region35: #{tpu_custom_call.1} parent=27 // pred_region
          %197 = dma.done [#allocation5], 64
        $region36: #{tpu_custom_call.1} parent=27 // pred_fallthru
          _
        %s198 = sand.u32 %s41, 1
        %s199 = scalar_lea.sflag [#allocation3], %s198
        %s200 = sand.u32 %s41, 1
        %s201 = smul.addr %s200, 8
        %s202 = scalar_lea.vmem [#allocation2], %s201
        %p203 = pneg %p54
        %p204 = pneg %p51
        %p205 = pneg %p75
        %p206 = pneg %p72
        %p207 = pneg %p101
        %p208 = pneg %p98
        %p209 = scmp.lt.s32.totalorder %s23, 1
        %s210 = scalar_select %p209, %s23, 1
        %s211 = smul.addr %s210, 4
        %s212 = scalar_lea.vmem %s2, %s211
        %p213 = pneg %p127
        %p214 = pneg %p124
        %p215 = scmp.lt.s32.totalorder %s23, 1
        %s216 = scalar_select %p215, %s23, 1
        %s217 = smul.addr %s216, 4
        %s218 = scalar_lea.vmem %s3, %s217
        %s219 = smul.u32 2, %s24
        %p220 = scmp.lt.s32.totalorder %s23, 1
        %s221 = scalar_select %p220, %s23, 1
        %s222 = smul.addr %s221, 4
        %s223 = scalar_lea.vmem %s2, %s222
        %p224 = scmp.lt.s32.totalorder %s23, 1
        %s225 = scalar_select %p224, %s23, 1
        %s226 = smul.addr %s225, 4
        %s227 = scalar_lea.vmem %s3, %s226
        %p228 = scmp.eq.s32.totalorder %s24, 0
        // Predicated region
        $region37: #{tpu_custom_call.1} parent=27 // pred_check
          %p229 = pneg %p228
        $region38: #{tpu_custom_call.1} parent=27 // pred_check_branch
          %231 = sbr.rel (%p229) target = $region40
        $region39: #{tpu_custom_call.1} parent=27 // pred_region
          %vm232 = vcmask 3072
          %233 = vst.msk [vmem:[%s223] sm:$0xf] %vm232, 0.0
          %234 = vst.msk [vmem:[%s227] sm:$0xf] %vm232, 0.0
        $region40: #{tpu_custom_call.1} parent=27 // pred_fallthru
          _
        %v235 = vld [vmem:[%s189] sm:$0xff]
        %v236 = vld [vmem:[#allocation4] sm:$0xf]
        %238 = vset.pattern.permute.xlu0 0
        %239 = vperm.xlu0 %238, %v236
        %v240 = vpop.permute.xlu0 %239
        %v243 = vlaneseq
        %v244 = vshrl.u32 %v243, 7
        %v245 = vsub.s32 0, %v244
        %v246 = vrot.slane %v235, %v245
        %v247 = vlaneseq
        %v248 = vshrl.u32 %v247, 7
        %v249 = vsub.s32 4, %v248
        %v250 = vrot.slane %v235, %v249
        %v253 = vlaneseq
        %v254 = vshrl.u32 %v253, 7
        %v255 = vsub.s32 0, %v254
        %v256 = vrot.slane %v246, %v255
        %v257 = vlaneseq
        %v258 = vshrl.u32 %v257, 7
        %v259 = vsub.s32 0, %v258
        %v260 = vrot.slane %v250, %v259
        %v261 = vmul.f32 %v240, %v256
        %v262 = vmul.f32 %v240, %v260
        %263 = vset.pattern.permute.xlu0 1
        %264 = vperm.xlu0 %263, %v236
        %v265 = vpop.permute.xlu0 %264
        %v267 = vlaneseq
        %v268 = vshrl.u32 %v267, 7
        %v269 = vsub.s32 1, %v268
        %v270 = vrot.slane %v235, %v269
        %v271 = vlaneseq
        %v272 = vshrl.u32 %v271, 7
        %v273 = vsub.s32 5, %v272
        %v274 = vrot.slane %v235, %v273
        %v277 = vlaneseq
        %v278 = vshrl.u32 %v277, 7
        %v279 = vsub.s32 1, %v278
        %v280 = vrot.slane %v270, %v279
        %v281 = vlaneseq
        %v282 = vshrl.u32 %v281, 7
        %v283 = vsub.s32 1, %v282
        %v284 = vrot.slane %v274, %v283
        %v285 = vmul.f32 %v265, %v280
        %v286 = vmul.f32 %v265, %v284
        %v287 = vadd.f32 %v261, %v285
        %v288 = vadd.f32 %v262, %v286
        %289 = vset.pattern.permute.xlu0 2
        %290 = vperm.xlu0 %289, %v236
        %v291 = vpop.permute.xlu0 %290
        %v293 = vlaneseq
        %v294 = vshrl.u32 %v293, 7
        %v295 = vsub.s32 2, %v294
        %v296 = vrot.slane %v235, %v295
        %v297 = vlaneseq
        %v298 = vshrl.u32 %v297, 7
        %v299 = vsub.s32 6, %v298
        %v300 = vrot.slane %v235, %v299
        %v303 = vlaneseq
        %v304 = vshrl.u32 %v303, 7
        %v305 = vsub.s32 2, %v304
        %v306 = vrot.slane %v296, %v305
        %v307 = vlaneseq
        %v308 = vshrl.u32 %v307, 7
        %v309 = vsub.s32 2, %v308
        %v310 = vrot.slane %v300, %v309
        %v311 = vmul.f32 %v291, %v306
        %v312 = vmul.f32 %v291, %v310
        %v313 = vadd.f32 %v287, %v311
        %v314 = vadd.f32 %v288, %v312
        %315 = vset.pattern.permute.xlu0 3
        %316 = vperm.xlu0 %315, %v236
        %v317 = vpop.permute.xlu0 %316
        %v319 = vlaneseq
        %v320 = vshrl.u32 %v319, 7
        %v321 = vsub.s32 3, %v320
        %v322 = vrot.slane %v235, %v321
        %v323 = vlaneseq
        %v324 = vshrl.u32 %v323, 7
        %v325 = vsub.s32 7, %v324
        %v326 = vrot.slane %v235, %v325
        %v329 = vlaneseq
        %v330 = vshrl.u32 %v329, 7
        %v331 = vsub.s32 3, %v330
        %v332 = vrot.slane %v322, %v331
        %v333 = vlaneseq
        %v334 = vshrl.u32 %v333, 7
        %v335 = vsub.s32 3, %v334
        %v336 = vrot.slane %v326, %v335
        %v337 = vmul.f32 %v317, %v332
        %v338 = vmul.f32 %v317, %v336
        %v339 = vadd.f32 %v313, %v337
        %v340 = vadd.f32 %v314, %v338
        %v341 = vld [vmem:[%s223] sm:$0xf]
        %vm342 = vcmask 1043456
        %v343 = vsel %vm342, %v339, 0.0
        %v344 = vsel %vm342, %v340, 0.0
        %v345 = vadd.f32 %v343, %v344
        %346 = vadd.xlane.f32.xlu0 %v345
        %v347 = vpop.xlane.xlu0 %346
        %v348 = vadd.f32 %v341, %v347
        %vm349 = vcmask 3072
        %350 = vst.msk [vmem:[%s223] sm:$0xf] %vm349, %v348
        %v351 = vld [vmem:[%s227] sm:$0xf]
        %v352 = vmul.f32 %v339, %v339
        %v353 = vmul.f32 %v340, %v340
        %v354 = vsel %vm342, %v352, 0.0
        %v355 = vsel %vm342, %v353, 0.0
        %v356 = vadd.f32 %v354, %v355
        %357 = vadd.xlane.f32.xlu0 %v356
        %v358 = vpop.xlane.xlu0 %357
        %v359 = vadd.f32 %v351, %v358
        %360 = vst.msk [vmem:[%s227] sm:$0xf] %vm349, %v359
        %p361 = scmp.lt.s32.totalorder %s23, 1
        %s362 = scalar_select %p361, %s23, 1
        %s363 = smul.addr %s362, 4
        %s364 = scalar_lea.vmem %s2, %s363
        %p365 = scmp.lt.s32.totalorder %s23, 1
        %s366 = scalar_select %p365, %s23, 1
        %s367 = smul.addr %s366, 4
        %s368 = scalar_lea.vmem %s3, %s367
        // Predicated region
        $region41: #{tpu_custom_call.1} parent=27 // pred_check
          %p369 = pneg %p98
        $region42: #{tpu_custom_call.1} parent=27 // pred_check_branch
          %371 = sbr.rel (%p369) target = $region44
        $region43: #{tpu_custom_call.1} parent=27 // pred_region
          _
        $region44: #{tpu_custom_call.1} parent=27 // pred_fallthru
          _
        // Predicated region
        $region45: #{tpu_custom_call.1} parent=27 // pred_check
          %p372 = pneg %p124
        $region46: #{tpu_custom_call.1} parent=27 // pred_check_branch
          %374 = sbr.rel (%p372) target = $region48
        $region47: #{tpu_custom_call.1} parent=27 // pred_region
          _
        $region48: #{tpu_custom_call.1} parent=27 // pred_fallthru
          _
      $region28: #{tpu_custom_call.1} parent=5 // pred_fallthru
        _
      %p375 = scmp.le.s32.totalorder 2, %s14
      // Predicated region
      $region49: #{tpu_custom_call.1} parent=5 // pred_check
        %p376 = pneg %p375
      $region50: #{tpu_custom_call.1} parent=5 // pred_check_branch
        %378 = sbr.rel (%p376) target = $region52
      $region51: #{tpu_custom_call.1} parent=5 // pred_region
        %s379 = ssub.s32 %s14, 2
        // Predicated region
        $region53: #{tpu_custom_call.1} parent=51 // pred_check
          %p380 = pneg %p104
        $region54: #{tpu_custom_call.1} parent=51 // pred_check_branch
          %382 = sbr.rel (%p380) target = $region56
        $region55: #{tpu_custom_call.1} parent=51 // pred_region
          %p383 = scmp.lt.s32.totalorder %s25, 1
          %s384 = scalar_select %p383, %s25, 1
          %s385 = smul.addr %s384, 4
          %s386 = scalar_lea.vmem %s2, %s385
        $region56: #{tpu_custom_call.1} parent=51 // pred_fallthru
          _
        // Predicated region
        $region57: #{tpu_custom_call.1} parent=51 // pred_check
          %p387 = pneg %p130
        $region58: #{tpu_custom_call.1} parent=51 // pred_check_branch
          %389 = sbr.rel (%p387) target = $region60
        $region59: #{tpu_custom_call.1} parent=51 // pred_region
          %p390 = scmp.lt.s32.totalorder %s25, 1
          %s391 = scalar_select %p390, %s25, 1
          %s392 = smul.addr %s391, 4
          %s393 = scalar_lea.vmem %s3, %s392
        $region60: #{tpu_custom_call.1} parent=51 // pred_fallthru
          _
      $region52: #{tpu_custom_call.1} parent=5 // pred_fallthru
        _
    $region6: #{tpu_custom_call.1} parent=1 // loop_footer
      %s18 = sadd.s32 1, %s14
    $region7: #{tpu_custom_call.1} parent=1 // loop_footer_branch
      %13 = sbr.rel target = $region3
    $region8: #{tpu_custom_call.1} parent=1 // loop_exit
      _
    %394 = vsyncpa [#allocation3], 1
    %s395 = scalar_lea.sflag [#allocation3], 1
    %396 = vsyncpa %s395, 1
    %397 = vsyncpa [#allocation5], 1

</llo_original>
